<compile_context>
chip_gen: v5e
topology: v5e:2x2
jax: 0.10.0
libtpu: 0.0.40
codegen_flags: <defaults>
</compile_context>

<pallas_src>
import math
from functools import partial

import jax
import jax.numpy as jnp
from jax.experimental import pallas as pl
from jax.experimental.pallas import tpu as pltpu


def _round_up(a, b):
    return ((a + b - 1) // b) * b


def _cdiv(a, b):
    return (a + b - 1) // b


def _gelu(x, approximate):
    if approximate:
        # tanh approximation -> EUP slot (recommended on v5e, where exact erf
        # lowers to a long f32 polynomial on the VALU slots).
        c = math.sqrt(2.0 / math.pi)
        return 0.5 * x * (1.0 + jnp.tanh(c * (x + 0.044715 * x * x * x)))
    # exact erf-based GELU == torch.nn.GELU() default
    return 0.5 * x * (1.0 + jax.lax.erf(x * (1.0 / math.sqrt(2.0))))


def evaluator_kernel(x_ref, wct_ref, bw_ref, b2_ref, o_ref, *, approximate_gelu):
    # x_ref  : (K, TR)  bf16 feature-major patch tile (K = C*ps*ps)
    # wct_ref: (Hh, K)  bf16 folded (patch_embed_W @ fc_hid_W).T  (resident)
    # bw_ref : (Hh, 2)  f32  column 0 = folded bias, column 1 = fc_last weight
    # b2_ref : (1,)     f32  fc_last bias (SMEM scalar)
    # o_ref  : (1, TR)  f32  lane-dense scores for this tile
    h = jnp.dot(wct_ref[...], x_ref[...],
                preferred_element_type=jnp.float32)               # (Hh, TR) f32
    # dropout layers are identity in eval mode
    h = _gelu(h + bw_ref[:, 0:1], approximate_gelu)
    # final 1-wide projection as VPU multiply + sublane reduce (no MXU pass)
    o_ref[...] = jnp.sum(h * bw_ref[:, 1:2], axis=0, keepdims=True) + b2_ref[0]


@partial(jax.jit, static_argnames=("patch_size", "tile_rows", "approximate_gelu"))
def base_image_evaluator(image, params, *, patch_size=4, tile_rows=8192,
                         approximate_gelu=False):
    """image: (N, C, H, W) float32 NCHW. Returns score (N, 1, 1, H//ps, W//ps)."""
    N, C, H, W = image.shape
    ps = patch_size
    Hp, Wp = H // ps, W // ps
    P = N * Hp * Wp
    K = C * ps * ps

    # im2col, feature-major: (K, P) with K flattened in (C, ps, ps) order to
    # match a Conv2d(stride=ps, kernel=ps) weight flatten.  Runs under the same
    # jit as the pallas_call so XLA fuses reshape+transpose+cast+pad into one
    # producer pass (one f32 read of the frame, one bf16 write).
    # TODO(synk): fold this unfold into the kernel's input DMA (NCHW image
    # blocks + in-kernel flatten, or CompilerParams(allow_input_fusion)) to
    # remove the remaining bf16 HBM round trip on very large frames.
    xT = image.reshape(N, C, Hp, ps, Wp, ps)
    xT = jnp.transpose(xT, (1, 3, 5, 0, 2, 4)).reshape(K, P)

    we, be, w1, b1, w2, b2 = params
    Hh = w1.shape[1]

    # Fold patch-embed and fc_hid in f32: no nonlinearity in between while the
    # backbone is reduced to its linear patch-embed projection (see TODO above).
    wct = jnp.transpose(we @ w1).astype(jnp.bfloat16)         # (Hh, K) bf16 MXU LHS
    bc_col = jnp.transpose(be @ w1 + b1)                      # (Hh, 1) folded bias
    bw = jnp.concatenate([bc_col, w2], axis=1).astype(jnp.float32)   # (Hh, 2)
    b2_s = b2.reshape(1).astype(jnp.float32)                  # (1,) SMEM scalar

    # Row-tile sizing: large tiles (multiple of 256 -> lane-dense DMA rows and
    # bf16-sublane friendly) to amortize the ~0.35us per-grid-step overhead;
    # keep the tile count even (>=2) when the problem is big enough so the
    # "parallel" axis can shard across the two v7x TensorCores.  Double-buffered
    # VMEM is only ~2*K*tr*2B (~3 MiB at tr=16384), far under every
    # generation's scoped-VMEM limit, so no vmem_limit_bytes override is needed.
    tr0 = max(256, min(_round_up(tile_rows, 256), _round_up(P, 256)))
    nt = _cdiv(P, tr0)
    if nt == 1 and P > 256:
        nt = 2
    elif nt > 1 and nt % 2 == 1:
        nt += 1
    tr = _round_up(_cdiv(P, nt), 256)
    P_pad = tr * nt

    x_b = jnp.pad(xT.astype(jnp.bfloat16), ((0, 0), (0, P_pad - P)))

    scores = pl.pallas_call(
        partial(evaluator_kernel, approximate_gelu=approximate_gelu),
        out_shape=jax.ShapeDtypeStruct((1, P_pad), jnp.float32),
        grid_spec=pltpu.PrefetchScalarGridSpec(
            num_scalar_prefetch=0,
            grid=(nt,),
            in_specs=[
                pl.BlockSpec((K, tr), lambda i: (0, i)),     # lane-dense patch tile
                pl.BlockSpec((Hh, K), lambda i: (0, 0)),     # folded weight (resident)
                pl.BlockSpec((Hh, 2), lambda i: (0, 0)),     # folded bias | fc_last w
                pl.BlockSpec(memory_space=pltpu.MemorySpace.SMEM),   # fc_last bias
            ],
            out_specs=pl.BlockSpec((1, tr), lambda i: (0, i)),       # lane-dense scores
        ),
        compiler_params=pltpu.CompilerParams(
            dimension_semantics=("parallel",)),   # shards tiles across TCs on v7x
    )(x_b, wct, bw, b2_s)

    # (1, P_pad) -> (N, 1, T=1, Hp, Wp)  (IQAHead Conv3d 1x1x1 output layout)
    score = scores[0, :P].reshape(N, Hp, Wp)
    return score[:, None, None, :, :]


if __name__ == "__main__":
    key = jax.random.PRNGKey(0)
    k_img, k_we, k_w1, k_b1, k_w2, k_b2 = jax.random.split(key, 6)

    # Small shapes consistent with the module: RGB image, patch-embed to D,
    # IQAHead hidden Hh, scalar score per spatial location.
    N, C, H, W = 2, 3, 16, 16
    ps = 4
    D, Hh = 32, 16
    K = C * ps * ps

    image = jax.random.normal(k_img, (N, C, H, W), dtype=jnp.float32)

    # Deterministic synthetic parameters (fan-in scaled normals, small biases).
    we = jax.random.normal(k_we, (K, D), dtype=jnp.float32) * (1.0 / math.sqrt(K))
    be = jnp.zeros((1, D), dtype=jnp.float32)
    w1 = jax.random.normal(k_w1, (D, Hh), dtype=jnp.float32) * (1.0 / math.sqrt(D))
    b1 = 0.1 * jax.random.normal(k_b1, (1, Hh), dtype=jnp.float32)
    w2 = jax.random.normal(k_w2, (Hh, 1), dtype=jnp.float32) * (1.0 / math.sqrt(Hh))
    b2 = 0.1 * jax.random.normal(k_b2, (1, 1), dtype=jnp.float32)

    params = (we, be, w1, b1, w2, b2)
    score = base_image_evaluator(image, params, patch_size=ps)
    score = jax.block_until_ready(score)

    # Pure-JAX f32 reference of the same (reduced-backbone) forward pass.
    Hp, Wp = H // ps, W // ps
    x = image.reshape(N, C, Hp, ps, Wp, ps).transpose(0, 2, 4, 1, 3, 5).reshape(-1, K)
    h = jax.nn.gelu(x @ (we @ w1) + (be @ w1 + b1), approximate=False)
    ref = (h @ w2 + b2).reshape(N, Hp, Wp)[:, None, None, :, :]

    assert score.shape == (N, 1, 1, Hp, Wp), score.shape
    assert score.dtype == jnp.float32
    assert bool(jnp.all(jnp.isfinite(score)))
    max_err = float(jnp.max(jnp.abs(score - ref)))
    assert max_err < 0.2, max_err   # generous tolerance for bf16 MXU operands
    print("KERNEL_OK")
</pallas_src>

<mosaic_0001>
module attributes {stable_mosaic.version = 11 : i64} {
  func.func @evaluator_kernel(%arg0: i32, %arg1: memref<48x256xbf16, #tpu.memory_space<vmem>>, %arg2: memref<16x48xbf16, #tpu.memory_space<vmem>>, %arg3: memref<16x2xf32, #tpu.memory_space<vmem>>, %arg4: memref<1xf32, #tpu.memory_space<smem>>, %arg5: memref<1x256xf32, #tpu.memory_space<vmem>>) attributes {dimension_semantics = [#tpu.dimension_semantics<parallel>], iteration_bounds = array<i64: 1>, scalar_prefetch = 0 : i64, scratch_operands = 0 : i64, tpu.core_type = #tpu.core_type<tc>, window_params = [{transform_indices = @transform_0, window_bounds = array<i64: 48, 256>}, {pipeline_mode = #tpu.pipeline_mode<synchronous>, transform_indices = @transform_1, window_bounds = array<i64: 16, 48>}, {pipeline_mode = #tpu.pipeline_mode<synchronous>, transform_indices = @transform_2, window_bounds = array<i64: 16, 2>}, {transform_indices = @transform_3, window_bounds = array<i64: 1>}, {transform_indices = @transform_4, window_bounds = array<i64: 1, 256>}]} {
    %c0 = arith.constant 0 : index
    %c0_0 = arith.constant 0 : index
    %0 = vector.load %arg2[%c0, %c0_0] : memref<16x48xbf16, #tpu.memory_space<vmem>>, vector<16x48xbf16>
    %c0_1 = arith.constant 0 : index
    %c0_2 = arith.constant 0 : index
    %1 = vector.load %arg1[%c0_1, %c0_2] : memref<48x256xbf16, #tpu.memory_space<vmem>>, vector<48x256xbf16>
    %cst = arith.constant dense<0.000000e+00> : vector<16x256xf32>
    %2 = tpu.matmul %0, %1, %cst {dimension_numbers = #tpu.dot_dimension_numbers<[1], [0], [0], [1], [0, 0, 1, 1], [], []>} : vector<16x48xbf16>, vector<48x256xbf16>, vector<16x256xf32> -> vector<16x256xf32>
    %c0_3 = arith.constant 0 : index
    %c0_4 = arith.constant 0 : index
    %3 = vector.load %arg3[%c0_3, %c0_4] : memref<16x2xf32, #tpu.memory_space<vmem>>, vector<16x1xf32>
    %4 = vector.broadcast %3 : vector<16x1xf32> to vector<16x256xf32>
    %5 = arith.addf %2, %4 : vector<16x256xf32>
    %cst_5 = arith.constant 5.000000e-01 : f32
    %6 = vector.broadcast %cst_5 : f32 to vector<16x256xf32>
    %7 = arith.mulf %6, %5 : vector<16x256xf32>
    %cst_6 = arith.constant 0.707106769 : f32
    %8 = vector.broadcast %cst_6 : f32 to vector<16x256xf32>
    %9 = arith.mulf %5, %8 : vector<16x256xf32>
    %10 = math.erf %9 : vector<16x256xf32>
    %cst_7 = arith.constant 1.000000e+00 : f32
    %11 = vector.broadcast %cst_7 : f32 to vector<16x256xf32>
    %12 = arith.addf %11, %10 : vector<16x256xf32>
    %13 = arith.mulf %7, %12 : vector<16x256xf32>
    %c0_8 = arith.constant 0 : index
    %c1 = arith.constant 1 : index
    %14 = vector.load %arg3[%c0_8, %c1] : memref<16x2xf32, #tpu.memory_space<vmem>>, vector<16x1xf32>
    %15 = vector.broadcast %14 : vector<16x1xf32> to vector<16x256xf32>
    %16 = arith.mulf %13, %15 : vector<16x256xf32>
    %cst_9 = arith.constant dense<0.000000e+00> : vector<256xf32>
    %17 = vector.multi_reduction <add>, %16, %cst_9 [0] : vector<16x256xf32> to vector<256xf32>
    %18 = vector.shape_cast %17 : vector<256xf32> to vector<1x256xf32>
    %c0_10 = arith.constant 0 : index
    %19 = memref.load %arg4[%c0_10] : memref<1xf32, #tpu.memory_space<smem>>
    %20 = vector.broadcast %19 : f32 to vector<1x256xf32>
    %21 = arith.addf %18, %20 : vector<1x256xf32>
    %c0_11 = arith.constant 0 : index
    %c0_12 = arith.constant 0 : index
    %22 = vector.load %arg5[%c0_11, %c0_12] : memref<1x256xf32, #tpu.memory_space<vmem>>, vector<1x256xf32>
    tpu.vector_store %arg5[%c0_11, %c0_12], %21 {strides = array<i32>} : memref<1x256xf32, #tpu.memory_space<vmem>>, vector<1x256xf32>,
    return
  }
  func.func @transform_0(%arg0: i32) -> (i32, i32) {
    %c0_i32 = arith.constant 0 : i32
    %c0_i32_0 = arith.constant 0 : i32
    return %c0_i32, %arg0 : i32, i32
  }
  func.func @transform_1(%arg0: i32) -> (i32, i32) {
    %c0_i32 = arith.constant 0 : i32
    %c0_i32_0 = arith.constant 0 : i32
    %c0_i32_1 = arith.constant 0 : i32
    return %c0_i32, %c0_i32_0 : i32, i32
  }
  func.func @transform_2(%arg0: i32) -> (i32, i32) {
    %c0_i32 = arith.constant 0 : i32
    %c0_i32_0 = arith.constant 0 : i32
    %c0_i32_1 = arith.constant 0 : i32
    return %c0_i32, %c0_i32_0 : i32, i32
  }
  func.func @transform_3(%arg0: i32) -> i32 {
    %c0_i32 = arith.constant 0 : i32
    %c0_i32_0 = arith.constant 0 : i32
    return %c0_i32 : i32
  }
  func.func @transform_4(%arg0: i32) -> (i32, i32) {
    %c0_i32 = arith.constant 0 : i32
    %c0_i32_0 = arith.constant 0 : i32
    return %c0_i32, %arg0 : i32, i32
  }
}

</mosaic_0001>

<llo_original>
// kernel: squeeze.1
$region0: #{squeeze.1}
  %s0 = inlined_call_operand.vmem [shape: f32[32], index: 0, kind: input, shape index: {}]
  %s1 = inlined_call_operand.hbm [shape: f32[2,1,1,4,4], index: 1, kind: output, shape index: {}]
  $region1: #{squeeze.1} parent=0
    #allocation0 [shape = 'u8[4096]{0}', space=vmem, size = 0x1000, scoped, tag = 'operand span for operand 1']
    #allocation1 [shape = 's32[1]{0}', space=sflag, size = 0x4, scoped, tag = 'scoped memory for squeeze.1']
    #allocation2 [shape = 'u8[8192]{0}', space=vmem, size = 0x2000, scoped, tag = 'scoped mem for output reshape']
    #allocation3 [shape = 'u8[4096]{0}', space=vmem, size = 0x1000, scoped, tag = 'scoped mem for input reshape']
    %2 = vsyncpa [#allocation1], 0
    %s4 = ssub.s32 2, 1
    %v5 = vld [vmem:[%s0] sm:%s4]
    %6 = vst [vmem:[#allocation3] sm:%s4] %v5
    %v7 = vld [vmem:[#allocation3] sm:$0x1]
    %vm8 = vcmask 31744
    %9 = vst.msk [vmem:[#allocation2] sm:$0x1] %vm8, %v7
    %v10 = vld [vmem:[#allocation3] sm:$0x1]
    %11 = vrot.lane.b32.xlu0 %v10, 124
    %v12 = vpop.permute.xlu0 %11
    %vm13 = vcmask 31744
    %s14 = scalar_lea.vmem [#allocation2], 1
    %15 = vst.msk [vmem:[%s14] sm:$0x1] %vm13, %v12
    %v16 = vld [vmem:[#allocation3] sm:$0x1]
    %17 = vrot.lane.b32.xlu0 %v16, 120
    %v18 = vpop.permute.xlu0 %17
    %vm19 = vcmask 31744
    %s20 = scalar_lea.vmem [#allocation2], 2
    %21 = vst.msk [vmem:[%s20] sm:$0x1] %vm19, %v18
    %v22 = vld [vmem:[#allocation3] sm:$0x1]
    %23 = vrot.lane.b32.xlu0 %v22, 116
    %v24 = vpop.permute.xlu0 %23
    %vm25 = vcmask 31744
    %s26 = scalar_lea.vmem [#allocation2], 3
    %27 = vst.msk [vmem:[%s26] sm:$0x1] %vm25, %v24
    %v28 = vld [vmem:[#allocation3] sm:$0x1]
    %29 = vrot.lane.b32.xlu0 %v28, 112
    %v30 = vpop.permute.xlu0 %29
    %vm31 = vcmask 31744
    %s32 = scalar_lea.vmem [#allocation2], 8
    %33 = vst.msk [vmem:[%s32] sm:$0x1] %vm31, %v30
    %v34 = vld [vmem:[#allocation3] sm:$0x1]
    %35 = vrot.lane.b32.xlu0 %v34, 108
    %v36 = vpop.permute.xlu0 %35
    %vm37 = vcmask 31744
    %s38 = scalar_lea.vmem [#allocation2], 9
    %39 = vst.msk [vmem:[%s38] sm:$0x1] %vm37, %v36
    %v40 = vld [vmem:[#allocation3] sm:$0x1]
    %41 = vrot.lane.b32.xlu0 %v40, 104
    %v42 = vpop.permute.xlu0 %41
    %vm43 = vcmask 31744
    %s44 = scalar_lea.vmem [#allocation2], 10
    %45 = vst.msk [vmem:[%s44] sm:$0x1] %vm43, %v42
    %v46 = vld [vmem:[#allocation3] sm:$0x1]
    %47 = vrot.lane.b32.xlu0 %v46, 100
    %v48 = vpop.permute.xlu0 %47
    %vm49 = vcmask 31744
    %s50 = scalar_lea.vmem [#allocation2], 11
    %51 = vst.msk [vmem:[%s50] sm:$0x1] %vm49, %v48
    %s53 = ssub.s32 16, 1
    %v54 = vld [vmem:[#allocation2] sm:%s53]
    %s56 = ssub.s32 16, 1
    %57 = vst [vmem:[#allocation0] sm:%s56] %v54
    %s58 = scalar_lea.vmem [#allocation2], 8
    %v59 = vld [vmem:[%s58] sm:%s53]
    %s61 = ssub.s32 16, 1
    %s62 = scalar_lea.vmem [#allocation0], 4
    %63 = vst [vmem:[%s62] sm:%s61] %v59
    %65 = vsyncadd [#allocation1], 0
    %s67 = sshll.u32 [#allocation0], 4
    %s68 = int_to_ptr.vmem [resolvable:$true] %s67
    %s69 = sshll.u32 %s1, 4
    %s70 = int_to_ptr.hbm [resolvable:$true] %s69
    %72 = dma.vmem_to_hbm [thread:$0]  %s68, 128, %s70, [#allocation1]
    %74 = dma.done [#allocation1], 128
    %75 = vsyncpa [#allocation1], 1

// kernel: base_image_evaluator.1
$region0: #{base_image_evaluator.1}
  #allocation0 [shape = 'u32[]', space=smem, size = 0x4, offset = 0x4, fixed_abs, tag = 'smem constant byte address 0x4 - core index']
  #allocation1 [shape = 'u32[72,128]{1,0:T(1,128)}', space=vmem, size = 0x9000, scoped, tag = 'internal scratch']
  #allocation2 [shape = 'f32[1]{0:T(128)S(6)}', space=smem, size = 0x200, scoped, tag = 'scoped memory for base_image_evaluator.1']
  %s0 = inlined_call_operand.vmem [shape: bf16[48,256], index: 0, kind: input, shape index: {}]
  %s1 = inlined_call_operand.vmem [shape: bf16[16,48], index: 1, kind: input, shape index: {}]
  %s2 = inlined_call_operand.vmem [shape: f32[16,2], index: 2, kind: input, shape index: {}]
  %s3 = inlined_call_operand.<no memory space> [shape: f32[1], index: 3, kind: input, shape index: {}]
  %s4 = inlined_call_operand.vmem [shape: f32[1,256], index: 4, kind: output, shape index: {}]
  %s5 = sld [smem:[#allocation0]]
  $region26: #{base_image_evaluator.1} parent=0
    _
  %s7 = ssub.s32 1, %s5
  %s8 = scalar_select 0, %s7, %s5
  %9 = sst [smem:[#allocation2]] %s3
  // Predicated region
  $region2: #{base_image_evaluator.1} parent=0 // pred_check
    _
  $region3: #{base_image_evaluator.1} parent=0 // pred_check_branch
    %11 = sbr.rel (0) target = $region5
  $region4: #{base_image_evaluator.1} parent=0 // pred_region
    _
  $region5: #{base_image_evaluator.1} parent=0 // pred_fallthru
    _
  // Predicated region
  $region6: #{base_image_evaluator.1} parent=0 // pred_check
    _
  $region7: #{base_image_evaluator.1} parent=0 // pred_check_branch
    %13 = sbr.rel (0) target = $region9
  $region8: #{base_image_evaluator.1} parent=0 // pred_region
    _
  $region9: #{base_image_evaluator.1} parent=0 // pred_fallthru
    _
  // Predicated region
  $region10: #{base_image_evaluator.1} parent=0 // pred_check
    _
  $region11: #{base_image_evaluator.1} parent=0 // pred_check_branch
    %15 = sbr.rel (0) target = $region13
  $region12: #{base_image_evaluator.1} parent=0 // pred_region
    _
  $region13: #{base_image_evaluator.1} parent=0 // pred_fallthru
    _
  // Predicated region
  $region14: #{base_image_evaluator.1} parent=0 // pred_check
    _
  $region15: #{base_image_evaluator.1} parent=0 // pred_check_branch
    %17 = sbr.rel (0) target = $region17
  $region16: #{base_image_evaluator.1} parent=0 // pred_region
    _
  $region17: #{base_image_evaluator.1} parent=0 // pred_fallthru
    _
  %v19 = vld [vmem:[%s1] sm:$0xf]
  %v20 = vld [vmem:[%s1 + $0x4] sm:$0xf]
  %v21 = vld [vmem:[%s0] sm:$0xff]
  %v22 = vld [vmem:[%s0 + $0x8] sm:$0xff]
  %v23 = vld [vmem:[%s0 + $0x10] sm:$0xff]
  %v24 = vld [vmem:[%s0 + $0x18] sm:$0xff]
  %v25 = vld [vmem:[%s0 + $0x20] sm:$0xff]
  %v26 = vld [vmem:[%s0 + $0x28] sm:$0xff]
  %v27 = vld [vmem:[%s2] sm:$0xff]
  %v28 = vld [vmem:[%s2 + $0x8] sm:$0xff]
  %30 = vset.pattern.permute.xlu0 0
  %31 = vperm.xlu0 %30, %v27
  %v32 = vpop.permute.xlu0 %31
  %35 = vset.pattern.permute.xlu0 0
  %36 = vperm.xlu0 %35, %v28
  %v37 = vpop.permute.xlu0 %36
  %v41 = vunpack.c.l.b16 %v19
  %v42 = vunpack.c.l.b16 %v20
  %v43 = vpack.c.b16 %v42, %v41
  %v50 = vunpack.c.l.b16 %v21
  %v51 = vunpack.c.h.b16 %v21
  %v52 = vunpack.c.l.b16 %v22
  %v53 = vunpack.c.h.b16 %v22
  %v54 = vunpack.c.l.b16 %v23
  %v55 = vunpack.c.h.b16 %v23
  %v56 = vunpack.c.l.b16 %v24
  %v57 = vunpack.c.h.b16 %v24
  %v58 = vunpack.c.l.b16 %v25
  %v59 = vunpack.c.h.b16 %v25
  %v60 = vunpack.c.l.b16 %v26
  %v61 = vunpack.c.h.b16 %v26
  %v62 = vpack.c.b16 %v52, %v50
  %v63 = vpack.c.b16 %v53, %v51
  %v64 = vpack.c.b16 %v56, %v54
  %v65 = vpack.c.b16 %v57, %v55
  %v66 = vpack.c.b16 %v60, %v58
  %v67 = vpack.c.b16 %v61, %v59
  %vm74 = vcmask 392192
  %v76 = vsel %vm74, %v43, 0
  %78 = vmatpush.bf16.msra.mxu0 0
  %79 = vmatpush.bf16.msra.mxu0 0
  %80 = vmatpush.bf16.msra.mxu0 0
  %81 = vmatpush.bf16.msra.mxu0 0
  %82 = vmatpush.bf16.msra.mxu0 0
  %83 = vmatpush.bf16.msra.mxu0 %v66
  %84 = vmatpush.bf16.msra.mxu0 %v64
  %85 = vmatpush.bf16.msra.mxu0 %v62
  %86 = vmatmul.bf16.gmra.mxu0 %v76
  %v87 = vpop.f32.mrf.mxu0
  %v88 = vadd.f32 %v32, %v87
  %v89 = vpop.f32.mrf.mxu0
  %v90 = vadd.f32 %v37, %v89
  %91 = vdwg.mxu0
  %92 = vmatpush.bf16.msra.mxu0 0
  %93 = vmatpush.bf16.msra.mxu0 0
  %94 = vmatpush.bf16.msra.mxu0 0
  %95 = vmatpush.bf16.msra.mxu0 0
  %96 = vmatpush.bf16.msra.mxu0 0
  %97 = vmatpush.bf16.msra.mxu0 %v67
  %98 = vmatpush.bf16.msra.mxu0 %v65
  %99 = vmatpush.bf16.msra.mxu0 %v63
  %100 = vmatmul.bf16.gmra.mxu0 %v76
  %v101 = vpop.f32.mrf.mxu0
  %v102 = vadd.f32 %v32, %v101
  %v103 = vpop.f32.mrf.mxu0
  %v104 = vadd.f32 %v37, %v103
  %105 = vdwg.mxu0
  %v106 = vmul.f32 %v88, 0.5
  %v107 = vmul.f32 %v102, 0.5
  %v108 = vmul.f32 %v90, 0.5
  %v109 = vmul.f32 %v104, 0.5
  %v110 = vmul.f32 %v88, 0.70710677
  %v111 = vmul.f32 %v102, 0.70710677
  %v112 = vmul.f32 %v90, 0.70710677
  %v113 = vmul.f32 %v104, 0.70710677
  %v114 = vmul.f32 %v110, %v110
  %v115 = vmin.f32 16.0, %v114
  %v116 = vmul.f32 %v115, 2.1237322e-06
  %v117 = vadd.f32 %v116, 0.00028619796
  %v118 = vmul.f32 %v115, %v117
  %v119 = vadd.f32 %v118, 0.0036580483
  %v120 = vmul.f32 %v115, %v119
  %v121 = vadd.f32 %v120, 0.05243302
  %v122 = vmul.f32 %v115, %v121
  %v123 = vadd.f32 %v122, 0.18741608
  %v124 = vmul.f32 %v115, %v123
  %v125 = vadd.f32 %v124, 1.1283791
  %v126 = vmul.f32 %v110, %v125
  %v127 = vmul.f32 %v115, 3.8918573e-05
  %v128 = vadd.f32 %v127, 0.001143296
  %v129 = vmul.f32 %v115, %v128
  %v130 = vadd.f32 %v129, 0.014752088
  %v131 = vmul.f32 %v115, %v130
  %v132 = vadd.f32 %v131, 0.112945676
  %v133 = vmul.f32 %v115, %v132
  %v134 = vadd.f32 %v133, 0.4994258
  %v135 = vmul.f32 %v115, %v134
  %v136 = vadd.f32 %v135, 1.0
  %v137 = vrcp.pop %v136
  %v138 = vmul.f32 %v136, %v137
  %v139 = vsub.f32 1.0, %v138
  %v140 = vmul.f32 %v137, %v139
  %v141 = vadd.f32 %v137, %v140
  %vm142 = vweird.f32 %v136
  %vm143 = vweird.f32 %v137
  %vm144 = vmor %vm142, %vm143
  %v145 = vsel %vm144, %v137, %v141
  %v146 = vand.u32 2147483647, %v136
  %vm147 = vcmp.eq.f32.partialorder %v146, 8.507059e+37
  %v148 = vand.u32 %v136, 2147483648
  %v149 = vor.u32 1.1754944e-38, %v148
  %v150 = vsel %vm147, %v149, %v145
  %v151 = vmul.f32 %v126, %v150
  %v152 = vmin.f32 %v151, 1.0
  %v153 = vmax.f32 %v152, -1.0
  %v154 = vmul.f32 %v111, %v111
  %v155 = vmin.f32 16.0, %v154
  %v156 = vmul.f32 %v155, 2.1237322e-06
  %v157 = vadd.f32 %v156, 0.00028619796
  %v158 = vmul.f32 %v155, %v157
  %v159 = vadd.f32 %v158, 0.0036580483
  %v160 = vmul.f32 %v155, %v159
  %v161 = vadd.f32 %v160, 0.05243302
  %v162 = vmul.f32 %v155, %v161
  %v163 = vadd.f32 %v162, 0.18741608
  %v164 = vmul.f32 %v155, %v163
  %v165 = vadd.f32 %v164, 1.1283791
  %v166 = vmul.f32 %v111, %v165
  %v167 = vmul.f32 %v155, 3.8918573e-05
  %v168 = vadd.f32 %v167, 0.001143296
  %v169 = vmul.f32 %v155, %v168
  %v170 = vadd.f32 %v169, 0.014752088
  %v171 = vmul.f32 %v155, %v170
  %v172 = vadd.f32 %v171, 0.112945676
  %v173 = vmul.f32 %v155, %v172
  %v174 = vadd.f32 %v173, 0.4994258
  %v175 = vmul.f32 %v155, %v174
  %v176 = vadd.f32 %v175, 1.0
  %v177 = vrcp.pop %v176
  %v178 = vmul.f32 %v176, %v177
  %v179 = vsub.f32 1.0, %v178
  %v180 = vmul.f32 %v177, %v179
  %v181 = vadd.f32 %v177, %v180
  %vm182 = vweird.f32 %v176
  %vm183 = vweird.f32 %v177
  %vm184 = vmor %vm182, %vm183
  %v185 = vsel %vm184, %v177, %v181
  %v186 = vand.u32 2147483647, %v176
  %vm187 = vcmp.eq.f32.partialorder %v186, 8.507059e+37
  %v188 = vand.u32 %v176, 2147483648
  %v189 = vor.u32 1.1754944e-38, %v188
  %v190 = vsel %vm187, %v189, %v185
  %v191 = vmul.f32 %v166, %v190
  %v192 = vmin.f32 %v191, 1.0
  %v193 = vmax.f32 %v192, -1.0
  %v194 = vmul.f32 %v112, %v112
  %v195 = vmin.f32 16.0, %v194
  %v196 = vmul.f32 %v195, 2.1237322e-06
  %v197 = vadd.f32 %v196, 0.00028619796
  %v198 = vmul.f32 %v195, %v197
  %v199 = vadd.f32 %v198, 0.0036580483
  %v200 = vmul.f32 %v195, %v199
  %v201 = vadd.f32 %v200, 0.05243302
  %v202 = vmul.f32 %v195, %v201
  %v203 = vadd.f32 %v202, 0.18741608
  %v204 = vmul.f32 %v195, %v203
  %v205 = vadd.f32 %v204, 1.1283791
  %v206 = vmul.f32 %v112, %v205
  %v207 = vmul.f32 %v195, 3.8918573e-05
  %v208 = vadd.f32 %v207, 0.001143296
  %v209 = vmul.f32 %v195, %v208
  %v210 = vadd.f32 %v209, 0.014752088
  %v211 = vmul.f32 %v195, %v210
  %v212 = vadd.f32 %v211, 0.112945676
  %v213 = vmul.f32 %v195, %v212
  %v214 = vadd.f32 %v213, 0.4994258
  %v215 = vmul.f32 %v195, %v214
  %v216 = vadd.f32 %v215, 1.0
  %v217 = vrcp.pop %v216
  %v218 = vmul.f32 %v216, %v217
  %v219 = vsub.f32 1.0, %v218
  %v220 = vmul.f32 %v217, %v219
  %v221 = vadd.f32 %v217, %v220
  %vm222 = vweird.f32 %v216
  %vm223 = vweird.f32 %v217
  %vm224 = vmor %vm222, %vm223
  %v225 = vsel %vm224, %v217, %v221
  %v226 = vand.u32 2147483647, %v216
  %vm227 = vcmp.eq.f32.partialorder %v226, 8.507059e+37
  %v228 = vand.u32 %v216, 2147483648
  %v229 = vor.u32 1.1754944e-38, %v228
  %v230 = vsel %vm227, %v229, %v225
  %v231 = vmul.f32 %v206, %v230
  %v232 = vmin.f32 %v231, 1.0
  %v233 = vmax.f32 %v232, -1.0
  %v234 = vmul.f32 %v113, %v113
  %v235 = vmin.f32 16.0, %v234
  %v236 = vmul.f32 %v235, 2.1237322e-06
  %v237 = vadd.f32 %v236, 0.00028619796
  %v238 = vmul.f32 %v235, %v237
  %v239 = vadd.f32 %v238, 0.0036580483
  %v240 = vmul.f32 %v235, %v239
  %v241 = vadd.f32 %v240, 0.05243302
  %v242 = vmul.f32 %v235, %v241
  %v243 = vadd.f32 %v242, 0.18741608
  %v244 = vmul.f32 %v235, %v243
  %v245 = vadd.f32 %v244, 1.1283791
  %v246 = vmul.f32 %v113, %v245
  %v247 = vmul.f32 %v235, 3.8918573e-05
  %v248 = vadd.f32 %v247, 0.001143296
  %v249 = vmul.f32 %v235, %v248
  %v250 = vadd.f32 %v249, 0.014752088
  %v251 = vmul.f32 %v235, %v250
  %v252 = vadd.f32 %v251, 0.112945676
  %v253 = vmul.f32 %v235, %v252
  %v254 = vadd.f32 %v253, 0.4994258
  %v255 = vmul.f32 %v235, %v254
  %v256 = vadd.f32 %v255, 1.0
  %v257 = vrcp.pop %v256
  %v258 = vmul.f32 %v256, %v257
  %v259 = vsub.f32 1.0, %v258
  %v260 = vmul.f32 %v257, %v259
  %v261 = vadd.f32 %v257, %v260
  %vm262 = vweird.f32 %v256
  %vm263 = vweird.f32 %v257
  %vm264 = vmor %vm262, %vm263
  %v265 = vsel %vm264, %v257, %v261
  %v266 = vand.u32 2147483647, %v256
  %vm267 = vcmp.eq.f32.partialorder %v266, 8.507059e+37
  %v268 = vand.u32 %v256, 2147483648
  %v269 = vor.u32 1.1754944e-38, %v268
  %v270 = vsel %vm267, %v269, %v265
  %v271 = vmul.f32 %v246, %v270
  %v272 = vmin.f32 %v271, 1.0
  %v273 = vmax.f32 %v272, -1.0
  %v274 = vadd.f32 %v153, 1.0
  %v275 = vadd.f32 %v193, 1.0
  %v276 = vadd.f32 %v233, 1.0
  %v277 = vadd.f32 %v273, 1.0
  %v278 = vmul.f32 %v106, %v274
  %v279 = vmul.f32 %v107, %v275
  %v280 = vmul.f32 %v108, %v276
  %v281 = vmul.f32 %v109, %v277
  %282 = vset.pattern.permute.xlu0 1
  %283 = vperm.xlu0 %282, %v27
  %v284 = vpop.permute.xlu0 %283
  %286 = vset.pattern.permute.xlu0 1
  %287 = vperm.xlu0 %286, %v28
  %v288 = vpop.permute.xlu0 %287
  %v290 = vmul.f32 %v278, %v284
  %v291 = vmul.f32 %v279, %v284
  %v292 = vmul.f32 %v280, %v288
  %v293 = vmul.f32 %v281, %v288
  %v294 = vadd.f32 %v290, %v292
  %v295 = vrot.slane %v294, 4
  %v296 = vadd.f32 %v294, %v295
  %v297 = vrot.slane %v296, 2
  %v298 = vadd.f32 %v296, %v297
  %v299 = vrot.slane %v298, 1
  %v300 = vadd.f32 %v298, %v299
  %v301 = vadd.f32 %v291, %v293
  %v302 = vrot.slane %v301, 4
  %v303 = vadd.f32 %v301, %v302
  %v304 = vrot.slane %v303, 2
  %v305 = vadd.f32 %v303, %v304
  %v306 = vrot.slane %v305, 1
  %v307 = vadd.f32 %v305, %v306
  %s308 = sld [smem:[#allocation2]]
  %v309 = vstv %s308
  %v310 = vadd.f32 %v300, %v309
  %v311 = vadd.f32 %v307, %v309
  %v314 = vrot.slane %v311, 7
  %vm315 = vcmask 1040384
  %v316 = vsel %vm315, %v310, %v314
  %v318 = vlaneseq
  %vm319 = vcmp.ge.s32.totalorder %v318, 0
  %vm320 = vcmp.lt.s32.totalorder %v318, 256
  %vm321 = vmand %vm319, %vm320
  %322 = vst.msk [vmem:[%s4] sm:$0x3] %vm321, %v316
  // Predicated region
  $region18: #{base_image_evaluator.1} parent=0 // pred_check
    _
  $region19: #{base_image_evaluator.1} parent=0 // pred_check_branch
    %324 = sbr.rel (0) target = $region21
  $region20: #{base_image_evaluator.1} parent=0 // pred_region
    _
  $region21: #{base_image_evaluator.1} parent=0 // pred_fallthru
    _
  // Predicated region
  $region22: #{base_image_evaluator.1} parent=0 // pred_check
    _
  $region23: #{base_image_evaluator.1} parent=0 // pred_check_branch
    %326 = sbr.rel (0) target = $region25
  $region24: #{base_image_evaluator.1} parent=0 // pred_region
    _
  $region25: #{base_image_evaluator.1} parent=0 // pred_fallthru
    _

</llo_original>
